<compile_context>
chip_gen: v5e
topology: v5e:2x2
jax: 0.10.0
libtpu: 0.0.40
codegen_flags: <defaults>
</compile_context>

<pallas_src>
import jax
import jax.numpy as jnp
from jax.experimental import pallas as pl
from jax.experimental.pallas import tpu as pltpu

INP = 32            # tabular feature count of the example model
HIDDEN = (256, 128)
DEFAULT_TB = 2048   # batch tile (sweep 1024-4096; must be a multiple of 128)
LANE = 128
SUBLANE = 8


def _round_up(n: int, m: int) -> int:
    return ((n + m - 1) // m) * m


def mlp_kernel(x_ref, w1_ref, b1_ref, w2_ref, b2_ref, w3_ref, b3_ref, o_ref):
    # Layer 1: Linear(inp, 256) + ReLU.   (Dropout is identity at inference.)
    # Matmul operands may be bf16; accumulation is f32; bias+ReLU math stays in f32
    # vregs and only the materialized intermediate is cast (convert-only, v5e-safe).
    h1 = jnp.dot(x_ref[...], w1_ref[...], preferred_element_type=jnp.float32)
    h1 = jnp.maximum(h1 + b1_ref[...], 0.0).astype(w2_ref.dtype)

    # Layer 2: Linear(256, 128) + ReLU.
    h2 = jnp.dot(h1, w2_ref[...], preferred_element_type=jnp.float32)
    h2 = jnp.maximum(h2 + b2_ref[...], 0.0).astype(w3_ref.dtype)

    # Head: Linear(128, 1) computed as w3_slab @ h2^T (contract both last dims, the
    # standard NT/flash-attention pattern) so the tb per-row results come out lane-dense
    # as an (8, tb) slab; only row 0 is the real head (w3 zero-padded to 8 sublanes).
    head = jax.lax.dot_general(
        w3_ref[...], h2,
        dimension_numbers=(((1,), (1,)), ((), ())),
        preferred_element_type=jnp.float32,
    )                                       # (8, tb)
    out_row = head[0:1, :] + b3_ref[0, 0]   # (1, tb); b3 read as an SMEM scalar
    o_ref[...] = out_row.reshape(o_ref.shape).astype(o_ref.dtype)  # (1, 1, tb)


def tabular_regressor_forward(x, params, *, tb=DEFAULT_TB, compute_dtype=jnp.bfloat16):
    """x: (B, F) float32 -> (B,) float32, matching TabularRegressor.forward (eval mode)."""
    w1, b1, w2, b2, w3, b3 = params
    B, F = x.shape
    H1 = w1.shape[1]
    H2 = w2.shape[1]

    # Batch tile: multiple of 128, never (much) larger than the batch, and capped so the
    # grid has >= 2 steps when the batch allows it (v7x megacore: 2 TCs share the
    # "parallel" batch axis; harmless one extra ~0.35us grid step on v5e/v6e).
    tb = min(tb,
             _round_up(B, LANE),
             max(LANE, _round_up(pl.cdiv(B, 2), LANE)))
    grid = (pl.cdiv(B, tb),)   # ragged last block; no batch-pad copy of x in HBM

    # Head weight as a sublane-aligned (8, H2) slab (row 0 = real weights, rest zeros).
    w3_mat = jnp.zeros((SUBLANE, H2), jnp.float32).at[0, :].set(w3.reshape(-1))
    b3_s = b3.reshape(1, 1).astype(jnp.float32)

    if compute_dtype != jnp.float32:
        # bf16 MXU operands on all generations (v5e/v6e/v7x MXUs are bf16-native);
        # accumulation stays f32 inside the kernel, bias/ReLU math stays f32 in vregs.
        x = x.astype(compute_dtype)        # single pass over x (no pad pass)
        w1 = w1.astype(compute_dtype)
        w2 = w2.astype(compute_dtype)
        w3_mat = w3_mat.astype(compute_dtype)

    out = pl.pallas_call(
        mlp_kernel,
        out_shape=jax.ShapeDtypeStruct((grid[0], 1, tb), jnp.float32),
        grid=grid,
        in_specs=[
            pl.BlockSpec((tb, F), lambda i: (i, 0)),           # x: only streamed operand; F=32 kept in HBM
            pl.BlockSpec((F, H1), lambda i: (0, 0)),           # w1 (VMEM-resident)
            pl.BlockSpec((1, H1), lambda i: (0, 0)),           # b1
            pl.BlockSpec((H1, H2), lambda i: (0, 0)),          # w2
            pl.BlockSpec((1, H2), lambda i: (0, 0)),           # b2
            pl.BlockSpec((SUBLANE, H2), lambda i: (0, 0)),     # w3 (8-row padded slab)
            pl.BlockSpec(memory_space=pltpu.MemorySpace.SMEM), # b3 scalar
        ],
        out_specs=pl.BlockSpec((1, 1, tb), lambda i: (i, 0, 0)),  # lane-dense output rows
        compiler_params=pltpu.CompilerParams(
            dimension_semantics=("parallel",),   # batch grid shards over v7x's 2 TCs
            vmem_limit_bytes=32 * 1024 * 1024,   # ample headroom when sweeping tb up to 4096
        ),
    )(x, w1, b1, w2, b2, w3_mat, b3_s)

    # (G, 1, tb) -> flat -> drop ragged tail; matches .squeeze(1) in the PyTorch forward.
    return out.reshape(-1)[:B]


def init_params(key):
    """Deterministic init mimicking nn.Linear default: U(-1/sqrt(fan_in), 1/sqrt(fan_in))."""
    ks = jax.random.split(key, 6)

    def lin(kw, kb, fan_in, fan_out):
        bound = 1.0 / jnp.sqrt(jnp.float32(fan_in))
        w = jax.random.uniform(kw, (fan_in, fan_out), jnp.float32, -bound, bound)
        b = jax.random.uniform(kb, (1, fan_out), jnp.float32, -bound, bound)
        return w, b

    w1, b1 = lin(ks[0], ks[1], INP, HIDDEN[0])
    w2, b2 = lin(ks[2], ks[3], HIDDEN[0], HIDDEN[1])
    w3, b3 = lin(ks[4], ks[5], HIDDEN[1], 1)
    return (w1, b1, w2, b2, w3, b3)


def reference_forward(x, params):
    w1, b1, w2, b2, w3, b3 = params
    h1 = jnp.maximum(x @ w1 + b1, 0.0)
    h2 = jnp.maximum(h1 @ w2 + b2, 0.0)
    return (h2 @ w3 + b3)[:, 0]


if __name__ == "__main__":
    key = jax.random.PRNGKey(0)
    kx, kp = jax.random.split(key)
    B = 64  # small demo batch; the wrapper handles ragged batch tiles internally
    x = jax.random.normal(kx, (B, INP), jnp.float32)
    params = init_params(kp)

    # TODO(synk): nn.Dropout is a no-op in eval mode; training-mode dropout masks are not emitted here.
    y_ref = reference_forward(x, params)

    # f32 path (tight check against the pure-JAX reference).
    y_f32 = jax.block_until_ready(
        tabular_regressor_forward(x, params, compute_dtype=jnp.float32))
    assert y_f32.shape == (B,)
    assert jnp.allclose(y_f32, y_ref, atol=1e-4, rtol=1e-4)

    # Default bf16-on-MXU path (f32 accumulation); looser tolerance for the operand cast.
    y_bf16 = jax.block_until_ready(tabular_regressor_forward(x, params))
    assert y_bf16.shape == (B,)
    assert jnp.allclose(y_bf16, y_ref, atol=5e-2, rtol=5e-2)

    print("KERNEL_OK")
</pallas_src>

<mosaic_0001>
module attributes {stable_mosaic.version = 11 : i64} {
  func.func @mlp_kernel(%arg0: i32, %arg1: memref<128x32xf32, #tpu.memory_space<vmem>>, %arg2: memref<32x256xf32, #tpu.memory_space<vmem>>, %arg3: memref<1x256xf32, #tpu.memory_space<vmem>>, %arg4: memref<256x128xf32, #tpu.memory_space<vmem>>, %arg5: memref<1x128xf32, #tpu.memory_space<vmem>>, %arg6: memref<8x128xf32, #tpu.memory_space<vmem>>, %arg7: memref<1x1xf32, #tpu.memory_space<smem>>, %arg8: memref<1x1x128xf32, #tpu.memory_space<vmem>>) attributes {dimension_semantics = [#tpu.dimension_semantics<parallel>], iteration_bounds = array<i64: 1>, scalar_prefetch = 0 : i64, scratch_operands = 0 : i64, tpu.core_type = #tpu.core_type<tc>, window_params = [{transform_indices = @transform_0, window_bounds = array<i64: 128, 32>}, {pipeline_mode = #tpu.pipeline_mode<synchronous>, transform_indices = @transform_1, window_bounds = array<i64: 32, 256>}, {pipeline_mode = #tpu.pipeline_mode<synchronous>, transform_indices = @transform_2, window_bounds = array<i64: 1, 256>}, {pipeline_mode = #tpu.pipeline_mode<synchronous>, transform_indices = @transform_3, window_bounds = array<i64: 256, 128>}, {pipeline_mode = #tpu.pipeline_mode<synchronous>, transform_indices = @transform_4, window_bounds = array<i64: 1, 128>}, {pipeline_mode = #tpu.pipeline_mode<synchronous>, transform_indices = @transform_5, window_bounds = array<i64: 8, 128>}, {transform_indices = @transform_6, window_bounds = array<i64: 1, 1>}, {transform_indices = @transform_7, window_bounds = array<i64: 1, 1, 128>}]} {
    %c0 = arith.constant 0 : index
    %c0_0 = arith.constant 0 : index
    %0 = vector.load %arg1[%c0, %c0_0] : memref<128x32xf32, #tpu.memory_space<vmem>>, vector<128x32xf32>
    %c0_1 = arith.constant 0 : index
    %c0_2 = arith.constant 0 : index
    %1 = vector.load %arg2[%c0_1, %c0_2] : memref<32x256xf32, #tpu.memory_space<vmem>>, vector<32x256xf32>
    %cst = arith.constant dense<0.000000e+00> : vector<128x256xf32>
    %2 = tpu.matmul %0, %1, %cst {dimension_numbers = #tpu.dot_dimension_numbers<[1], [0], [0], [1], [0, 0, 1, 1], [], []>} : vector<128x32xf32>, vector<32x256xf32>, vector<128x256xf32> -> vector<128x256xf32>
    %c0_3 = arith.constant 0 : index
    %c0_4 = arith.constant 0 : index
    %3 = vector.load %arg3[%c0_3, %c0_4] : memref<1x256xf32, #tpu.memory_space<vmem>>, vector<1x256xf32>
    %4 = vector.broadcast %3 : vector<1x256xf32> to vector<128x256xf32>
    %5 = arith.addf %2, %4 : vector<128x256xf32>
    %cst_5 = arith.constant 0.000000e+00 : f32
    %6 = vector.broadcast %cst_5 : f32 to vector<128x256xf32>
    %7 = arith.maximumf %5, %6 : vector<128x256xf32>
    %c0_6 = arith.constant 0 : index
    %c0_7 = arith.constant 0 : index
    %8 = vector.load %arg4[%c0_6, %c0_7] : memref<256x128xf32, #tpu.memory_space<vmem>>, vector<256x128xf32>
    %cst_8 = arith.constant dense<0.000000e+00> : vector<128x128xf32>
    %9 = tpu.matmul %7, %8, %cst_8 {dimension_numbers = #tpu.dot_dimension_numbers<[1], [0], [0], [1], [0, 0, 1, 1], [], []>} : vector<128x256xf32>, vector<256x128xf32>, vector<128x128xf32> -> vector<128x128xf32>
    %c0_9 = arith.constant 0 : index
    %c0_10 = arith.constant 0 : index
    %10 = vector.load %arg5[%c0_9, %c0_10] : memref<1x128xf32, #tpu.memory_space<vmem>>, vector<1x128xf32>
    %11 = vector.broadcast %10 : vector<1x128xf32> to vector<128x128xf32>
    %12 = arith.addf %9, %11 : vector<128x128xf32>
    %cst_11 = arith.constant 0.000000e+00 : f32
    %13 = vector.broadcast %cst_11 : f32 to vector<128x128xf32>
    %14 = arith.maximumf %12, %13 : vector<128x128xf32>
    %c0_12 = arith.constant 0 : index
    %c0_13 = arith.constant 0 : index
    %15 = vector.load %arg6[%c0_12, %c0_13] : memref<8x128xf32, #tpu.memory_space<vmem>>, vector<8x128xf32>
    %cst_14 = arith.constant dense<0.000000e+00> : vector<8x128xf32>
    %16 = tpu.matmul %15, %14, %cst_14 {dimension_numbers = #tpu.dot_dimension_numbers<[1], [1], [0], [0], [0, 0, 1, 0], [], []>} : vector<8x128xf32>, vector<128x128xf32>, vector<8x128xf32> -> vector<8x128xf32>
    %17 = vector.extract_strided_slice %16 {offsets = [0, 0], sizes = [1, 128], strides = [1, 1]} : vector<8x128xf32> to vector<1x128xf32>
    %c0_15 = arith.constant 0 : index
    %c0_16 = arith.constant 0 : index
    %18 = memref.load %arg7[%c0_15, %c0_16] : memref<1x1xf32, #tpu.memory_space<smem>>
    %19 = vector.broadcast %18 : f32 to vector<1x128xf32>
    %20 = arith.addf %17, %19 : vector<1x128xf32>
    %21 = vector.shape_cast %20 : vector<1x128xf32> to vector<1x1x128xf32>
    %c0_17 = arith.constant 0 : index
    %c0_18 = arith.constant 0 : index
    %c0_19 = arith.constant 0 : index
    %22 = vector.load %arg8[%c0_17, %c0_18, %c0_19] : memref<1x1x128xf32, #tpu.memory_space<vmem>>, vector<1x1x128xf32>
    tpu.vector_store %arg8[%c0_17, %c0_18, %c0_19], %21 {strides = array<i32>} : memref<1x1x128xf32, #tpu.memory_space<vmem>>, vector<1x1x128xf32>,
    return
  }
  func.func @transform_0(%arg0: i32) -> (i32, i32) {
    %c0_i32 = arith.constant 0 : i32
    %c0_i32_0 = arith.constant 0 : i32
    return %arg0, %c0_i32 : i32, i32
  }
  func.func @transform_1(%arg0: i32) -> (i32, i32) {
    %c0_i32 = arith.constant 0 : i32
    %c0_i32_0 = arith.constant 0 : i32
    %c0_i32_1 = arith.constant 0 : i32
    return %c0_i32, %c0_i32_0 : i32, i32
  }
  func.func @transform_2(%arg0: i32) -> (i32, i32) {
    %c0_i32 = arith.constant 0 : i32
    %c0_i32_0 = arith.constant 0 : i32
    %c0_i32_1 = arith.constant 0 : i32
    return %c0_i32, %c0_i32_0 : i32, i32
  }
  func.func @transform_3(%arg0: i32) -> (i32, i32) {
    %c0_i32 = arith.constant 0 : i32
    %c0_i32_0 = arith.constant 0 : i32
    %c0_i32_1 = arith.constant 0 : i32
    return %c0_i32, %c0_i32_0 : i32, i32
  }
  func.func @transform_4(%arg0: i32) -> (i32, i32) {
    %c0_i32 = arith.constant 0 : i32
    %c0_i32_0 = arith.constant 0 : i32
    %c0_i32_1 = arith.constant 0 : i32
    return %c0_i32, %c0_i32_0 : i32, i32
  }
  func.func @transform_5(%arg0: i32) -> (i32, i32) {
    %c0_i32 = arith.constant 0 : i32
    %c0_i32_0 = arith.constant 0 : i32
    %c0_i32_1 = arith.constant 0 : i32
    return %c0_i32, %c0_i32_0 : i32, i32
  }
  func.func @transform_6(%arg0: i32) -> (i32, i32) {
    %c0_i32 = arith.constant 0 : i32
    %c0_i32_0 = arith.constant 0 : i32
    %c0_i32_1 = arith.constant 0 : i32
    return %c0_i32, %c0_i32_0 : i32, i32
  }
  func.func @transform_7(%arg0: i32) -> (i32, i32, i32) {
    %c0_i32 = arith.constant 0 : i32
    %c0_i32_0 = arith.constant 0 : i32
    %c0_i32_1 = arith.constant 0 : i32
    return %arg0, %c0_i32, %c0_i32_0 : i32, i32, i32
  }
}

</mosaic_0001>

<llo_original>
// kernel: tpu_custom_call.1
$region0: #{tpu_custom_call.1}
  #allocation0 [shape = 'u32[]', space=smem, size = 0x4, offset = 0x4, fixed_abs, tag = 'smem constant byte address 0x4 - core index']
  #allocation1 [shape = 'u32[72,128]{1,0:T(1,128)}', space=vmem, size = 0x9000, scoped, tag = 'internal scratch']
  #allocation2 [shape = 'f32[1,1]{1,0:T(1,128)S(6)}', space=smem, size = 0x200, scoped, tag = 'scoped memory for tpu_custom_call.1']
  %s0 = inlined_call_operand.vmem [shape: f32[64,32], index: 0, kind: input, shape index: {}]
  %s1 = inlined_call_operand.vmem [shape: f32[32,256], index: 1, kind: input, shape index: {}]
  %s2 = inlined_call_operand.vmem [shape: f32[1,256], index: 2, kind: input, shape index: {}]
  %s3 = inlined_call_operand.hbm [shape: f32[256,128], index: 3, kind: input, shape index: {}]
  %s4 = inlined_call_operand.vmem [shape: f32[1,128], index: 4, kind: input, shape index: {}]
  %s5 = inlined_call_operand.vmem [shape: f32[8,128], index: 5, kind: input, shape index: {}]
  %s6 = inlined_call_operand.<no memory space> [shape: f32[1,1], index: 6, kind: input, shape index: {}]
  %s7 = inlined_call_operand.hbm [shape: f32[1,1,128], index: 7, kind: output, shape index: {}]
  %s8 = sld [smem:[#allocation0]]
  $region42: #{tpu_custom_call.1} parent=0
    _
  %s10 = ssub.s32 1, %s8
  %s11 = scalar_select 0, %s10, %s8
  %12 = sst [smem:[#allocation2]] %s6
  $region1: #{tpu_custom_call.1} parent=0
    #allocation3 [shape = 'u8[131072]{0}', space=vmem, size = 0x20000, scoped, tag = 'input window, operand 3, single buffered']
    #allocation4 [shape = 's32[1]{0}', space=sflag, size = 0x4, scoped, tag = 'scoped memory for tpu_custom_call.1']
    #allocation5 [shape = 's32[1]{0}', space=sflag, size = 0x4, scoped, tag = 'scoped memory for tpu_custom_call.1']
    #allocation6 [shape = 'u8[512]{0}', space=vmem, size = 0x400, scoped, tag = 'output window, operand 0, single buffered']
    %13 = vsyncpa [#allocation4], 0
    %14 = vsyncpa [#allocation5], 0
    // Predicated region
    $region2: #{tpu_custom_call.1} parent=1 // pred_check
      _
    $region3: #{tpu_custom_call.1} parent=1 // pred_check_branch
      %16 = sbr.rel (0) target = $region5
    $region4: #{tpu_custom_call.1} parent=1 // pred_region
      _
    $region5: #{tpu_custom_call.1} parent=1 // pred_fallthru
      _
    // Predicated region
    $region6: #{tpu_custom_call.1} parent=1 // pred_check
      _
    $region7: #{tpu_custom_call.1} parent=1 // pred_check_branch
      %18 = sbr.rel (0) target = $region9
    $region8: #{tpu_custom_call.1} parent=1 // pred_region
      _
    $region9: #{tpu_custom_call.1} parent=1 // pred_fallthru
      _
    // Predicated region
    $region10: #{tpu_custom_call.1} parent=1 // pred_check
      _
    $region11: #{tpu_custom_call.1} parent=1 // pred_check_branch
      %20 = sbr.rel (0) target = $region13
    $region12: #{tpu_custom_call.1} parent=1 // pred_region
      _
    $region13: #{tpu_custom_call.1} parent=1 // pred_fallthru
      _
    // Predicated region
    $region14: #{tpu_custom_call.1} parent=1 // pred_check
      _
    $region15: #{tpu_custom_call.1} parent=1 // pred_check_branch
      %22 = sbr.rel (0) target = $region17
    $region16: #{tpu_custom_call.1} parent=1 // pred_region
      %24 = vsyncadd [#allocation4], 0
      %s25 = sshll.u32 %s3, 4
      %s26 = int_to_ptr.hbm [resolvable:$true] %s25
      %s27 = sshll.u32 [#allocation3], 4
      %s28 = int_to_ptr.vmem [resolvable:$true] %s27
      %33 = dma.hbm_to_vmem [thread:$0]  %s26, 4096, %s28, [#allocation4], 128, 128, 8
    $region17: #{tpu_custom_call.1} parent=1 // pred_fallthru
      _
    // Predicated region
    $region18: #{tpu_custom_call.1} parent=1 // pred_check
      _
    $region19: #{tpu_custom_call.1} parent=1 // pred_check_branch
      %35 = sbr.rel (0) target = $region21
    $region20: #{tpu_custom_call.1} parent=1 // pred_region
      _
    $region21: #{tpu_custom_call.1} parent=1 // pred_fallthru
      _
    // Predicated region
    $region22: #{tpu_custom_call.1} parent=1 // pred_check
      _
    $region23: #{tpu_custom_call.1} parent=1 // pred_check_branch
      %37 = sbr.rel (0) target = $region25
    $region24: #{tpu_custom_call.1} parent=1 // pred_region
      _
    $region25: #{tpu_custom_call.1} parent=1 // pred_fallthru
      _
    // Predicated region
    $region26: #{tpu_custom_call.1} parent=1 // pred_check
      _
    $region27: #{tpu_custom_call.1} parent=1 // pred_check_branch
      %39 = sbr.rel (0) target = $region29
    $region28: #{tpu_custom_call.1} parent=1 // pred_region
      _
    $region29: #{tpu_custom_call.1} parent=1 // pred_fallthru
      _
    // Predicated region
    $region30: #{tpu_custom_call.1} parent=1 // pred_check
      _
    $region31: #{tpu_custom_call.1} parent=1 // pred_check_branch
      %41 = sbr.rel (0) target = $region33
    $region32: #{tpu_custom_call.1} parent=1 // pred_region
      %43 = dma.done [#allocation4], 4096
    $region33: #{tpu_custom_call.1} parent=1 // pred_fallthru
      _
    %v44 = vld [vmem:[%s0] sm:$0xff]
    %v45 = vld [vmem:[%s0 + $0x8] sm:$0xff]
    %v46 = vld [vmem:[%s0 + $0x10] sm:$0xff]
    %v47 = vld [vmem:[%s0 + $0x18] sm:$0xff]
    %v48 = vld [vmem:[%s0 + $0x20] sm:$0xff]
    %v49 = vld [vmem:[%s0 + $0x28] sm:$0xff]
    %v50 = vld [vmem:[%s0 + $0x30] sm:$0xff]
    %v51 = vld [vmem:[%s0 + $0x38] sm:$0xff]
    %v52 = vld [vmem:[%s0 + $0x40] sm:$0xff]
    %v53 = vld [vmem:[%s0 + $0x48] sm:$0xff]
    %v54 = vld [vmem:[%s0 + $0x50] sm:$0xff]
    %v55 = vld [vmem:[%s0 + $0x58] sm:$0xff]
    %v56 = vld [vmem:[%s0 + $0x60] sm:$0xff]
    %v57 = vld [vmem:[%s0 + $0x68] sm:$0xff]
    %v58 = vld [vmem:[%s0 + $0x70] sm:$0xff]
    %v59 = vld [vmem:[%s0 + $0x78] sm:$0xff]
    %v60 = vld [vmem:[%s1] sm:$0xff]
    %v61 = vld [vmem:[%s1 + $0x8] sm:$0xff]
    %v62 = vld [vmem:[%s1 + $0x10] sm:$0xff]
    %v63 = vld [vmem:[%s1 + $0x18] sm:$0xff]
    %v64 = vld [vmem:[%s1 + $0x20] sm:$0xff]
    %v65 = vld [vmem:[%s1 + $0x28] sm:$0xff]
    %v66 = vld [vmem:[%s1 + $0x30] sm:$0xff]
    %v67 = vld [vmem:[%s1 + $0x38] sm:$0xff]
    %v68 = vld [vmem:[%s2] sm:$0x3]
    %v70 = vperm.slane %v68, 0
    %v71 = vperm.slane %v68, 1
    %vm74 = vcmask 261120
    %v76 = vsel %vm74, %v44, 0
    %v79 = vsel %vm74, %v45, 0
    %v82 = vsel %vm74, %v46, 0
    %v85 = vsel %vm74, %v47, 0
    %v88 = vsel %vm74, %v48, 0
    %v91 = vsel %vm74, %v49, 0
    %v94 = vsel %vm74, %v50, 0
    %v97 = vsel %vm74, %v51, 0
    %v100 = vsel %vm74, %v52, 0
    %v103 = vsel %vm74, %v53, 0
    %v106 = vsel %vm74, %v54, 0
    %v109 = vsel %vm74, %v55, 0
    %v112 = vsel %vm74, %v56, 0
    %v115 = vsel %vm74, %v57, 0
    %v118 = vsel %vm74, %v58, 0
    %v121 = vsel %vm74, %v59, 0
    %123 = vmatpush.msra.mxu0 0.0
    %124 = vmatpush.msra.mxu0 0.0
    %125 = vmatpush.msra.mxu0 0.0
    %126 = vmatpush.msra.mxu0 0.0
    %127 = vmatpush.msra.mxu0 0.0
    %128 = vmatpush.msra.mxu0 0.0
    %129 = vmatpush.msra.mxu0 0.0
    %130 = vmatpush.msra.mxu0 0.0
    %131 = vmatpush.msra.mxu0 0.0
    %132 = vmatpush.msra.mxu0 0.0
    %133 = vmatpush.msra.mxu0 0.0
    %134 = vmatpush.msra.mxu0 0.0
    %135 = vmatpush.msra.mxu0 %v66
    %136 = vmatpush.msra.mxu0 %v64
    %137 = vmatpush.msra.mxu0 %v62
    %138 = vmatpush.msra.mxu0 %v60
    %139 = vmatmul.f32.gmra.mxu0 %v76
    %v140 = vpop.f32.mrf.mxu0
    %v141 = vadd.f32 %v70, %v140
    %142 = vmatmul.f32.gmra.mxu0 %v79
    %v143 = vpop.f32.mrf.mxu0
    %v144 = vadd.f32 %v70, %v143
    %145 = vmatmul.f32.gmra.mxu0 %v82
    %v146 = vpop.f32.mrf.mxu0
    %v147 = vadd.f32 %v70, %v146
    %148 = vmatmul.f32.gmra.mxu0 %v85
    %v149 = vpop.f32.mrf.mxu0
    %v150 = vadd.f32 %v70, %v149
    %151 = vmatmul.f32.gmra.mxu0 %v88
    %v152 = vpop.f32.mrf.mxu0
    %v153 = vadd.f32 %v70, %v152
    %154 = vmatmul.f32.gmra.mxu0 %v91
    %v155 = vpop.f32.mrf.mxu0
    %v156 = vadd.f32 %v70, %v155
    %157 = vmatmul.f32.gmra.mxu0 %v94
    %v158 = vpop.f32.mrf.mxu0
    %v159 = vadd.f32 %v70, %v158
    %160 = vmatmul.f32.gmra.mxu0 %v97
    %v161 = vpop.f32.mrf.mxu0
    %v162 = vadd.f32 %v70, %v161
    %163 = vmatmul.f32.gmra.mxu0 %v100
    %v164 = vpop.f32.mrf.mxu0
    %v165 = vadd.f32 %v70, %v164
    %166 = vmatmul.f32.gmra.mxu0 %v103
    %v167 = vpop.f32.mrf.mxu0
    %v168 = vadd.f32 %v70, %v167
    %169 = vmatmul.f32.gmra.mxu0 %v106
    %v170 = vpop.f32.mrf.mxu0
    %v171 = vadd.f32 %v70, %v170
    %172 = vmatmul.f32.gmra.mxu0 %v109
    %v173 = vpop.f32.mrf.mxu0
    %v174 = vadd.f32 %v70, %v173
    %175 = vmatmul.f32.gmra.mxu0 %v112
    %v176 = vpop.f32.mrf.mxu0
    %v177 = vadd.f32 %v70, %v176
    %178 = vmatmul.f32.gmra.mxu0 %v115
    %v179 = vpop.f32.mrf.mxu0
    %v180 = vadd.f32 %v70, %v179
    %181 = vmatmul.f32.gmra.mxu0 %v118
    %v182 = vpop.f32.mrf.mxu0
    %v183 = vadd.f32 %v70, %v182
    %184 = vmatmul.f32.gmra.mxu0 %v121
    %v185 = vpop.f32.mrf.mxu0
    %v186 = vadd.f32 %v70, %v185
    %187 = vdwg.mxu0
    %188 = vmatpush.msra.mxu0 0.0
    %189 = vmatpush.msra.mxu0 0.0
    %190 = vmatpush.msra.mxu0 0.0
    %191 = vmatpush.msra.mxu0 0.0
    %192 = vmatpush.msra.mxu0 0.0
    %193 = vmatpush.msra.mxu0 0.0
    %194 = vmatpush.msra.mxu0 0.0
    %195 = vmatpush.msra.mxu0 0.0
    %196 = vmatpush.msra.mxu0 0.0
    %197 = vmatpush.msra.mxu0 0.0
    %198 = vmatpush.msra.mxu0 0.0
    %199 = vmatpush.msra.mxu0 0.0
    %200 = vmatpush.msra.mxu0 %v67
    %201 = vmatpush.msra.mxu0 %v65
    %202 = vmatpush.msra.mxu0 %v63
    %203 = vmatpush.msra.mxu0 %v61
    %204 = vmatmul.f32.gmra.mxu0 %v76
    %v205 = vpop.f32.mrf.mxu0
    %v206 = vadd.f32 %v71, %v205
    %207 = vmatmul.f32.gmra.mxu0 %v79
    %v208 = vpop.f32.mrf.mxu0
    %v209 = vadd.f32 %v71, %v208
    %210 = vmatmul.f32.gmra.mxu0 %v82
    %v211 = vpop.f32.mrf.mxu0
    %v212 = vadd.f32 %v71, %v211
    %213 = vmatmul.f32.gmra.mxu0 %v85
    %v214 = vpop.f32.mrf.mxu0
    %v215 = vadd.f32 %v71, %v214
    %216 = vmatmul.f32.gmra.mxu0 %v88
    %v217 = vpop.f32.mrf.mxu0
    %v218 = vadd.f32 %v71, %v217
    %219 = vmatmul.f32.gmra.mxu0 %v91
    %v220 = vpop.f32.mrf.mxu0
    %v221 = vadd.f32 %v71, %v220
    %222 = vmatmul.f32.gmra.mxu0 %v94
    %v223 = vpop.f32.mrf.mxu0
    %v224 = vadd.f32 %v71, %v223
    %225 = vmatmul.f32.gmra.mxu0 %v97
    %v226 = vpop.f32.mrf.mxu0
    %v227 = vadd.f32 %v71, %v226
    %228 = vmatmul.f32.gmra.mxu0 %v100
    %v229 = vpop.f32.mrf.mxu0
    %v230 = vadd.f32 %v71, %v229
    %231 = vmatmul.f32.gmra.mxu0 %v103
    %v232 = vpop.f32.mrf.mxu0
    %v233 = vadd.f32 %v71, %v232
    %234 = vmatmul.f32.gmra.mxu0 %v106
    %v235 = vpop.f32.mrf.mxu0
    %v236 = vadd.f32 %v71, %v235
    %237 = vmatmul.f32.gmra.mxu0 %v109
    %v238 = vpop.f32.mrf.mxu0
    %v239 = vadd.f32 %v71, %v238
    %240 = vmatmul.f32.gmra.mxu0 %v112
    %v241 = vpop.f32.mrf.mxu0
    %v242 = vadd.f32 %v71, %v241
    %243 = vmatmul.f32.gmra.mxu0 %v115
    %v244 = vpop.f32.mrf.mxu0
    %v245 = vadd.f32 %v71, %v244
    %246 = vmatmul.f32.gmra.mxu0 %v118
    %v247 = vpop.f32.mrf.mxu0
    %v248 = vadd.f32 %v71, %v247
    %249 = vmatmul.f32.gmra.mxu0 %v121
    %v250 = vpop.f32.mrf.mxu0
    %v251 = vadd.f32 %v71, %v250
    %252 = vdwg.mxu0
    %v253 = vmax.f32 %v141, 0.0
    %v254 = vmax.f32 %v206, 0.0
    %v255 = vmax.f32 %v144, 0.0
    %v256 = vmax.f32 %v209, 0.0
    %v257 = vmax.f32 %v147, 0.0
    %v258 = vmax.f32 %v212, 0.0
    %v259 = vmax.f32 %v150, 0.0
    %v260 = vmax.f32 %v215, 0.0
    %v261 = vmax.f32 %v153, 0.0
    %v262 = vmax.f32 %v218, 0.0
    %v263 = vmax.f32 %v156, 0.0
    %v264 = vmax.f32 %v221, 0.0
    %v265 = vmax.f32 %v159, 0.0
    %v266 = vmax.f32 %v224, 0.0
    %v267 = vmax.f32 %v162, 0.0
    %v268 = vmax.f32 %v227, 0.0
    %v269 = vmax.f32 %v165, 0.0
    %v270 = vmax.f32 %v230, 0.0
    %v271 = vmax.f32 %v168, 0.0
    %v272 = vmax.f32 %v233, 0.0
    %v273 = vmax.f32 %v171, 0.0
    %v274 = vmax.f32 %v236, 0.0
    %v275 = vmax.f32 %v174, 0.0
    %v276 = vmax.f32 %v239, 0.0
    %v277 = vmax.f32 %v177, 0.0
    %v278 = vmax.f32 %v242, 0.0
    %v279 = vmax.f32 %v180, 0.0
    %v280 = vmax.f32 %v245, 0.0
    %v281 = vmax.f32 %v183, 0.0
    %v282 = vmax.f32 %v248, 0.0
    %v283 = vmax.f32 %v186, 0.0
    %v284 = vmax.f32 %v251, 0.0
    %v285 = vld [vmem:[#allocation3] sm:$0xff]
    %v286 = vld [vmem:[#allocation3 + $0x8] sm:$0xff]
    %v287 = vld [vmem:[#allocation3 + $0x10] sm:$0xff]
    %v288 = vld [vmem:[#allocation3 + $0x18] sm:$0xff]
    %v289 = vld [vmem:[#allocation3 + $0x20] sm:$0xff]
    %v290 = vld [vmem:[#allocation3 + $0x28] sm:$0xff]
    %v291 = vld [vmem:[#allocation3 + $0x30] sm:$0xff]
    %v292 = vld [vmem:[#allocation3 + $0x38] sm:$0xff]
    %v293 = vld [vmem:[#allocation3 + $0x40] sm:$0xff]
    %v294 = vld [vmem:[#allocation3 + $0x48] sm:$0xff]
    %v295 = vld [vmem:[#allocation3 + $0x50] sm:$0xff]
    %v296 = vld [vmem:[#allocation3 + $0x58] sm:$0xff]
    %v297 = vld [vmem:[#allocation3 + $0x60] sm:$0xff]
    %v298 = vld [vmem:[#allocation3 + $0x68] sm:$0xff]
    %v299 = vld [vmem:[#allocation3 + $0x70] sm:$0xff]
    %v300 = vld [vmem:[#allocation3 + $0x78] sm:$0xff]
    %v301 = vld [vmem:[#allocation3 + $0x80] sm:$0xff]
    %v302 = vld [vmem:[#allocation3 + $0x88] sm:$0xff]
    %v303 = vld [vmem:[#allocation3 + $0x90] sm:$0xff]
    %v304 = vld [vmem:[#allocation3 + $0x98] sm:$0xff]
    %v305 = vld [vmem:[#allocation3 + $0xa0] sm:$0xff]
    %v306 = vld [vmem:[#allocation3 + $0xa8] sm:$0xff]
    %v307 = vld [vmem:[#allocation3 + $0xb0] sm:$0xff]
    %v308 = vld [vmem:[#allocation3 + $0xb8] sm:$0xff]
    %v309 = vld [vmem:[#allocation3 + $0xc0] sm:$0xff]
    %v310 = vld [vmem:[#allocation3 + $0xc8] sm:$0xff]
    %v311 = vld [vmem:[#allocation3 + $0xd0] sm:$0xff]
    %v312 = vld [vmem:[#allocation3 + $0xd8] sm:$0xff]
    %v313 = vld [vmem:[#allocation3 + $0xe0] sm:$0xff]
    %v314 = vld [vmem:[#allocation3 + $0xe8] sm:$0xff]
    %v315 = vld [vmem:[#allocation3 + $0xf0] sm:$0xff]
    %v316 = vld [vmem:[#allocation3 + $0xf8] sm:$0xff]
    %v317 = vld [vmem:[%s4] sm:$0x1]
    %v319 = vperm.slane %v317, 0
    %321 = vmatpush.msra.mxu0 %v300
    %322 = vmatpush.msra.mxu0 %v299
    %323 = vmatpush.msra.mxu0 %v298
    %324 = vmatpush.msra.mxu0 %v297
    %325 = vmatpush.msra.mxu0 %v296
    %326 = vmatpush.msra.mxu0 %v295
    %327 = vmatpush.msra.mxu0 %v294
    %328 = vmatpush.msra.mxu0 %v293
    %329 = vmatpush.msra.mxu0 %v292
    %330 = vmatpush.msra.mxu0 %v291
    %331 = vmatpush.msra.mxu0 %v290
    %332 = vmatpush.msra.mxu0 %v289
    %333 = vmatpush.msra.mxu0 %v288
    %334 = vmatpush.msra.mxu0 %v287
    %335 = vmatpush.msra.mxu0 %v286
    %336 = vmatpush.msra.mxu0 %v285
    %337 = vmatmul.f32.gmra.mxu0 %v253
    %v338 = vpop.f32.mrf.mxu0
    %v339 = vadd.f32 %v319, %v338
    %340 = vmatmul.f32.gmra.mxu0 %v255
    %v341 = vpop.f32.mrf.mxu0
    %v342 = vadd.f32 %v319, %v341
    %343 = vmatmul.f32.gmra.mxu0 %v257
    %v344 = vpop.f32.mrf.mxu0
    %v345 = vadd.f32 %v319, %v344
    %346 = vmatmul.f32.gmra.mxu0 %v259
    %v347 = vpop.f32.mrf.mxu0
    %v348 = vadd.f32 %v319, %v347
    %349 = vmatmul.f32.gmra.mxu0 %v261
    %v350 = vpop.f32.mrf.mxu0
    %v351 = vadd.f32 %v319, %v350
    %352 = vmatmul.f32.gmra.mxu0 %v263
    %v353 = vpop.f32.mrf.mxu0
    %v354 = vadd.f32 %v319, %v353
    %355 = vmatmul.f32.gmra.mxu0 %v265
    %v356 = vpop.f32.mrf.mxu0
    %v357 = vadd.f32 %v319, %v356
    %358 = vmatmul.f32.gmra.mxu0 %v267
    %v359 = vpop.f32.mrf.mxu0
    %v360 = vadd.f32 %v319, %v359
    %361 = vmatmul.f32.gmra.mxu0 %v269
    %v362 = vpop.f32.mrf.mxu0
    %v363 = vadd.f32 %v319, %v362
    %364 = vmatmul.f32.gmra.mxu0 %v271
    %v365 = vpop.f32.mrf.mxu0
    %v366 = vadd.f32 %v319, %v365
    %367 = vmatmul.f32.gmra.mxu0 %v273
    %v368 = vpop.f32.mrf.mxu0
    %v369 = vadd.f32 %v319, %v368
    %370 = vmatmul.f32.gmra.mxu0 %v275
    %v371 = vpop.f32.mrf.mxu0
    %v372 = vadd.f32 %v319, %v371
    %373 = vmatmul.f32.gmra.mxu0 %v277
    %v374 = vpop.f32.mrf.mxu0
    %v375 = vadd.f32 %v319, %v374
    %376 = vmatmul.f32.gmra.mxu0 %v279
    %v377 = vpop.f32.mrf.mxu0
    %v378 = vadd.f32 %v319, %v377
    %379 = vmatmul.f32.gmra.mxu0 %v281
    %v380 = vpop.f32.mrf.mxu0
    %v381 = vadd.f32 %v319, %v380
    %382 = vmatmul.f32.gmra.mxu0 %v283
    %v383 = vpop.f32.mrf.mxu0
    %v384 = vadd.f32 %v319, %v383
    %385 = vdwg.mxu0
    %386 = vmatpush.msra.mxu0 %v316
    %387 = vmatpush.msra.mxu0 %v315
    %388 = vmatpush.msra.mxu0 %v314
    %389 = vmatpush.msra.mxu0 %v313
    %390 = vmatpush.msra.mxu0 %v312
    %391 = vmatpush.msra.mxu0 %v311
    %392 = vmatpush.msra.mxu0 %v310
    %393 = vmatpush.msra.mxu0 %v309
    %394 = vmatpush.msra.mxu0 %v308
    %395 = vmatpush.msra.mxu0 %v307
    %396 = vmatpush.msra.mxu0 %v306
    %397 = vmatpush.msra.mxu0 %v305
    %398 = vmatpush.msra.mxu0 %v304
    %399 = vmatpush.msra.mxu0 %v303
    %400 = vmatpush.msra.mxu0 %v302
    %401 = vmatpush.msra.mxu0 %v301
    %402 = vmatmul.f32.gmra.mxu0 %v254
    %v403 = vpop.f32.mrf.mxu0
    %v404 = vadd.f32 %v339, %v403
    %405 = vmatmul.f32.gmra.mxu0 %v256
    %v406 = vpop.f32.mrf.mxu0
    %v407 = vadd.f32 %v342, %v406
    %408 = vmatmul.f32.gmra.mxu0 %v258
    %v409 = vpop.f32.mrf.mxu0
    %v410 = vadd.f32 %v345, %v409
    %411 = vmatmul.f32.gmra.mxu0 %v260
    %v412 = vpop.f32.mrf.mxu0
    %v413 = vadd.f32 %v348, %v412
    %414 = vmatmul.f32.gmra.mxu0 %v262
    %v415 = vpop.f32.mrf.mxu0
    %v416 = vadd.f32 %v351, %v415
    %417 = vmatmul.f32.gmra.mxu0 %v264
    %v418 = vpop.f32.mrf.mxu0
    %v419 = vadd.f32 %v354, %v418
    %420 = vmatmul.f32.gmra.mxu0 %v266
    %v421 = vpop.f32.mrf.mxu0
    %v422 = vadd.f32 %v357, %v421
    %423 = vmatmul.f32.gmra.mxu0 %v268
    %v424 = vpop.f32.mrf.mxu0
    %v425 = vadd.f32 %v360, %v424
    %426 = vmatmul.f32.gmra.mxu0 %v270
    %v427 = vpop.f32.mrf.mxu0
    %v428 = vadd.f32 %v363, %v427
    %429 = vmatmul.f32.gmra.mxu0 %v272
    %v430 = vpop.f32.mrf.mxu0
    %v431 = vadd.f32 %v366, %v430
    %432 = vmatmul.f32.gmra.mxu0 %v274
    %v433 = vpop.f32.mrf.mxu0
    %v434 = vadd.f32 %v369, %v433
    %435 = vmatmul.f32.gmra.mxu0 %v276
    %v436 = vpop.f32.mrf.mxu0
    %v437 = vadd.f32 %v372, %v436
    %438 = vmatmul.f32.gmra.mxu0 %v278
    %v439 = vpop.f32.mrf.mxu0
    %v440 = vadd.f32 %v375, %v439
    %441 = vmatmul.f32.gmra.mxu0 %v280
    %v442 = vpop.f32.mrf.mxu0
    %v443 = vadd.f32 %v378, %v442
    %444 = vmatmul.f32.gmra.mxu0 %v282
    %v445 = vpop.f32.mrf.mxu0
    %v446 = vadd.f32 %v381, %v445
    %447 = vmatmul.f32.gmra.mxu0 %v284
    %v448 = vpop.f32.mrf.mxu0
    %v449 = vadd.f32 %v384, %v448
    %450 = vdwg.mxu0
    %v451 = vmax.f32 %v404, 0.0
    %v452 = vmax.f32 %v407, 0.0
    %v453 = vmax.f32 %v410, 0.0
    %v454 = vmax.f32 %v413, 0.0
    %v455 = vmax.f32 %v416, 0.0
    %v456 = vmax.f32 %v419, 0.0
    %v457 = vmax.f32 %v422, 0.0
    %v458 = vmax.f32 %v425, 0.0
    %v459 = vmax.f32 %v428, 0.0
    %v460 = vmax.f32 %v431, 0.0
    %v461 = vmax.f32 %v434, 0.0
    %v462 = vmax.f32 %v437, 0.0
    %v463 = vmax.f32 %v440, 0.0
    %v464 = vmax.f32 %v443, 0.0
    %v465 = vmax.f32 %v446, 0.0
    %v466 = vmax.f32 %v449, 0.0
    %v467 = vld [vmem:[%s5] sm:$0xff]
    %468 = vmatpush.xpose.msra.mxu0 %v466
    %469 = vmatpush.xpose.msra.mxu0 %v465
    %470 = vmatpush.xpose.msra.mxu0 %v464
    %471 = vmatpush.xpose.msra.mxu0 %v463
    %472 = vmatpush.xpose.msra.mxu0 %v462
    %473 = vmatpush.xpose.msra.mxu0 %v461
    %474 = vmatpush.xpose.msra.mxu0 %v460
    %475 = vmatpush.xpose.msra.mxu0 %v459
    %476 = vmatpush.xpose.msra.mxu0 %v458
    %477 = vmatpush.xpose.msra.mxu0 %v457
    %478 = vmatpush.xpose.msra.mxu0 %v456
    %479 = vmatpush.xpose.msra.mxu0 %v455
    %480 = vmatpush.xpose.msra.mxu0 %v454
    %481 = vmatpush.xpose.msra.mxu0 %v453
    %482 = vmatpush.xpose.msra.mxu0 %v452
    %483 = vmatpush.xpose.msra.mxu0 %v451
    %484 = vmatmul.f32.gmra.mxu0 %v467
    %v485 = vpop.f32.mrf.mxu0
    %v486 = vadd.f32 0.0, %v485
    %487 = vdwg.mxu0
    %s488 = sld [smem:[#allocation2]]
    %v489 = vstv %s488
    %v490 = vadd.f32 %v486, %v489
    %491 = vst [vmem:[#allocation6] sm:$0x1] %v490
    // Predicated region
    $region34: #{tpu_custom_call.1} parent=1 // pred_check
      _
    $region35: #{tpu_custom_call.1} parent=1 // pred_check_branch
      %493 = sbr.rel (0) target = $region37
    $region36: #{tpu_custom_call.1} parent=1 // pred_region
      %495 = vsyncadd [#allocation5], 0
      %s497 = sshll.u32 [#allocation6], 4
      %s498 = int_to_ptr.vmem [resolvable:$true] %s497
      %s499 = sshll.u32 %s7, 4
      %s500 = int_to_ptr.hbm [resolvable:$true] %s499
      %502 = dma.vmem_to_hbm [thread:$0]  %s498, 16, %s500, [#allocation5]
    $region37: #{tpu_custom_call.1} parent=1 // pred_fallthru
      _
    // Predicated region
    $region38: #{tpu_custom_call.1} parent=1 // pred_check
      _
    $region39: #{tpu_custom_call.1} parent=1 // pred_check_branch
      %504 = sbr.rel (0) target = $region41
    $region40: #{tpu_custom_call.1} parent=1 // pred_region
      %506 = dma.done [#allocation5], 16
    $region41: #{tpu_custom_call.1} parent=1 // pred_fallthru
      _
    %507 = vsyncpa [#allocation4], 1
    %508 = vsyncpa [#allocation5], 1

</llo_original>
